<compile_context>
chip_gen: v6e
topology: v6e:2x2x1
jax: 0.10.0
libtpu: 0.0.40
codegen_flags: <defaults>
</compile_context>

<pallas_src>
import jax
import jax.numpy as jnp
from jax.experimental import pallas as pl
from jax.experimental.pallas import tpu as pltpu


# ----------------------------- helpers ------------------------------------- #
def _round_up(x, m):
    return ((x + m - 1) // m) * m


def _nbytes(a):
    return int(a.size) * a.dtype.itemsize


# ----------------------------- Pallas kernels ------------------------------ #
def _make_kernel(out_dim_is_one: bool):
    def kernel(h_ref, z_ref, w1h_ref, w1z_ref, b1_ref, w2_ref, b2_ref, o_ref):
        # In-kernel bf16 cast (no-op if inputs already bf16); f32 MXU accumulate.
        a_h = h_ref[...].astype(jnp.bfloat16)
        a_z = z_ref[...].astype(jnp.bfloat16)
        acc = jnp.dot(a_h, w1h_ref[...], preferred_element_type=jnp.float32)
        acc = acc + jnp.dot(a_z, w1z_ref[...], preferred_element_type=jnp.float32)
        h1 = jnp.maximum(acc + b1_ref[...], 0.0)            # (tile_b, m_pad) f32

        if out_dim_is_one:
            # (model_dim, 1) matmul degenerates -> VPU multiply + XLU lane reduce.
            # w2_ref is a (1, m_pad) f32 row; b2 is an SMEM scalar.
            logits = jnp.sum(h1 * w2_ref[...], axis=-1, keepdims=True) + b2_ref[0, 0]
        else:
            logits = jnp.dot(h1.astype(w2_ref.dtype), w2_ref[...],
                             preferred_element_type=jnp.float32) + b2_ref[...]

        o_ref[...] = jax.nn.sigmoid(logits).astype(o_ref.dtype)

    return kernel


# ---------------------- One-time parameter preparation --------------------- #
def prepare_params(params, hidden_dim):
    """Hoisted layout prep (do once, not per forward call):
       split W1 (removes the concat), bf16-cast MXU operands, zero-pad
       model_dim to a multiple of 128 lanes (full MXU / lane utilization)."""
    w1, b1, w2, b2 = params["w1"], params["b1"], params["w2"], params["b2"]
    in_dim, model_dim = w1.shape
    out_dim = w2.shape[1]
    assert 0 < hidden_dim < in_dim

    m_pad = _round_up(model_dim, 128)
    if m_pad != model_dim:
        # Zero pads: ReLU(0*x + 0) = 0 and zero W2 rows contribute 0 -> exact.
        w1 = jnp.pad(w1, ((0, 0), (0, m_pad - model_dim)))
        b1 = jnp.pad(b1, (0, m_pad - model_dim))
        w2 = jnp.pad(w2, ((0, m_pad - model_dim), (0, 0)))

    prepared = {
        "hidden_dim": int(hidden_dim),
        "out_dim": int(out_dim),
        "w1_h": w1[:hidden_dim].astype(jnp.bfloat16),
        "w1_z": w1[hidden_dim:].astype(jnp.bfloat16),
        "b1": jnp.reshape(b1, (1, m_pad)).astype(jnp.float32),
    }
    if out_dim == 1:
        prepared["w2"] = jnp.reshape(w2, (1, m_pad)).astype(jnp.float32)   # VPU row
        prepared["b2"] = jnp.reshape(b2, (1, 1)).astype(jnp.float32)       # SMEM scalar
    else:
        prepared["w2"] = w2.astype(jnp.bfloat16)
        prepared["b2"] = jnp.reshape(b2, (1, out_dim)).astype(jnp.float32)
    return prepared


# ------------------------------- Wrapper ----------------------------------- #
def continue_predictor_forward(h, z, params, *, vmem_budget_bytes=40 << 20,
                               max_tile_b=1024):
    """h: (B, hidden_dim), z: (B, latent_dim * embedding_dim) -> (B, output_dim).

    `params` may be raw {"w1","b1","w2","b2"} (prepared on the fly) or the
    output of prepare_params() (preferred: hoists the W1 split/cast/pad)."""
    if "w1_h" not in params:
        params = prepare_params(params, h.shape[1])

    B, hidden_dim = h.shape
    z_dim = z.shape[1]
    w1_h, w1_z = params["w1_h"], params["w1_z"]
    b1_row, w2_op, b2_op = params["b1"], params["w2"], params["b2"]
    out_dim = params["out_dim"]
    out_dim_is_one = out_dim == 1
    m_pad = w1_h.shape[1]
    assert w1_h.shape[0] == hidden_dim and w1_z.shape[0] == z_dim

    # ---- batch tiling derived from a VMEM budget (v7x: 64 MiB/TC physical) ----
    ROW_ALIGN = 16                                    # bf16 sublane packing
    act_itemsize = max(h.dtype.itemsize, z.dtype.itemsize)
    weight_bytes = (_nbytes(w1_h) + _nbytes(w1_z) + _nbytes(b1_row)
                    + _nbytes(w2_op) + _nbytes(b2_op))
    fixed_bytes = 2 * weight_bytes                    # conservative: double-buffered weights
    per_row_bytes = (2 * (hidden_dim + z_dim) * act_itemsize   # double-buffered h/z tiles
                     + 2 * out_dim * 4                          # double-buffered out tile
                     + 2 * m_pad * 4)                           # f32 acc + h1 intermediates
    tile_cap = max(ROW_ALIGN, (vmem_budget_bytes - fixed_bytes) // per_row_bytes)
    tile_b = int(min(max_tile_b, tile_cap))
    tile_b = max(ROW_ALIGN, (tile_b // ROW_ALIGN) * ROW_ALIGN)
    if B >= 2 * ROW_ALIGN:
        # Force >= 2 grid steps: megacore sharding + DMA/compute pipelining.
        tile_b = min(tile_b, _round_up((B + 1) // 2, ROW_ALIGN))
    if B <= tile_b:
        tile_b = B                                    # single full-batch block
    grid = (pl.cdiv(B, tile_b),)

    vmem_need = fixed_bytes + per_row_bytes * tile_b + (2 << 20)
    vmem_limit = int(min(max(vmem_need, 32 << 20), 96 << 20))

    flops = 2 * B * (hidden_dim + z_dim) * m_pad + 2 * B * m_pad * out_dim
    bytes_accessed = _nbytes(h) + _nbytes(z) + weight_bytes + B * out_dim * 4
    cost = pl.CostEstimate(flops=int(flops), transcendentals=int(B * out_dim),
                           bytes_accessed=int(bytes_accessed))

    out_shape = jax.ShapeDtypeStruct((B, out_dim), jnp.float32)
    kernel = _make_kernel(out_dim_is_one)

    def run(single_buffer_weights):
        if single_buffer_weights:
            def wspec(shape):
                return pl.BlockSpec(shape, lambda i: (0, 0),
                                    pipeline_mode=pl.Buffered(1))
        else:
            def wspec(shape):
                return pl.BlockSpec(shape, lambda i: (0, 0))

        if out_dim_is_one:
            w2_spec = wspec((1, m_pad))
            b2_spec = pl.BlockSpec(memory_space=pltpu.MemorySpace.SMEM)
        else:
            w2_spec = wspec((m_pad, out_dim))
            b2_spec = wspec((1, out_dim))

        in_specs = [
            pl.BlockSpec((tile_b, hidden_dim), lambda i: (i, 0)),   # h rows
            pl.BlockSpec((tile_b, z_dim), lambda i: (i, 0)),        # z rows
            wspec((hidden_dim, m_pad)),                             # W1_h (resident)
            wspec((z_dim, m_pad)),                                  # W1_z (resident)
            wspec((1, m_pad)),                                      # b1   (resident)
            w2_spec,                                                # W2   (resident)
            b2_spec,                                                # b2
        ]
        return pl.pallas_call(
            kernel,
            out_shape=out_shape,
            grid=grid,
            in_specs=in_specs,
            out_specs=pl.BlockSpec((tile_b, out_dim), lambda i: (i, 0)),
            compiler_params=pltpu.CompilerParams(
                dimension_semantics=("parallel",),
                vmem_limit_bytes=vmem_limit,
            ),
            cost_estimate=cost,
        )(h, z, w1_h, w1_z, b1_row, w2_op, b2_op)

    try:
        return run(True)          # single-buffer the grid-invariant weights
    except Exception:             # pipeline_mode unsupported -> default buffering
        return run(False)


# ----------------------- Deterministic parameter init ---------------------- #
def init_params(key, hidden_dim, latent_dim, embedding_dim, output_dim, model_dim):
    """PyTorch nn.Linear-style uniform(-1/sqrt(fan_in), 1/sqrt(fan_in)) init (f32)."""
    in_dim = hidden_dim + embedding_dim * latent_dim
    k1, k2, k3, k4 = jax.random.split(key, 4)
    bound1 = 1.0 / jnp.sqrt(in_dim)
    bound2 = 1.0 / jnp.sqrt(model_dim)
    return {
        "w1": jax.random.uniform(k1, (in_dim, model_dim), jnp.float32, -bound1, bound1),
        "b1": jax.random.uniform(k2, (model_dim,), jnp.float32, -bound1, bound1),
        "w2": jax.random.uniform(k3, (model_dim, output_dim), jnp.float32, -bound2, bound2),
        "b2": jax.random.uniform(k4, (output_dim,), jnp.float32, -bound2, bound2),
    }


# ------------------------------ Reference ---------------------------------- #
def reference_forward(h, z, params):
    x = jnp.concatenate([h, z], axis=-1)
    h1 = jnp.maximum(x @ params["w1"] + params["b1"][None, :], 0.0)
    return jax.nn.sigmoid(h1 @ params["w2"] + params["b2"][None, :])


if __name__ == "__main__":
    hidden_dim, latent_dim, embedding_dim, model_dim = 32, 4, 8, 32
    key = jax.random.PRNGKey(0)
    kp, kh, kz, kp2, kh2, kz2 = jax.random.split(key, 6)

    # --- Case 1: ContinuePredictor head (output_dim = 1), small batch, grid=(1,) ---
    batch = 8
    h = jax.random.normal(kh, (batch, hidden_dim), jnp.float32)
    z = jax.random.normal(kz, (batch, latent_dim * embedding_dim), jnp.float32)
    params1 = init_params(kp, hidden_dim, latent_dim, embedding_dim, 1, model_dim)
    prepared1 = prepare_params(params1, hidden_dim)        # one-time prep (hoisted)
    out1 = jax.block_until_ready(continue_predictor_forward(h, z, prepared1))
    ref1 = reference_forward(h, z, params1)
    assert out1.shape == (batch, 1), out1.shape
    # bf16 MXU operands -> looser tolerance than pure-f32.
    assert jnp.allclose(out1, ref1, atol=2e-2, rtol=2e-2), "mismatch (out_dim=1, B=8)"

    # --- Case 2: larger batch exercising multi-tile grid + ragged last block ---
    batch2 = 100
    h2 = jax.random.normal(kh2, (batch2, hidden_dim), jnp.float32)
    z2 = jax.random.normal(kz2, (batch2, latent_dim * embedding_dim), jnp.float32)
    out2 = jax.block_until_ready(continue_predictor_forward(h2, z2, prepared1))
    ref2 = reference_forward(h2, z2, params1)
    assert out2.shape == (batch2, 1), out2.shape
    assert jnp.allclose(out2, ref2, atol=2e-2, rtol=2e-2), "mismatch (out_dim=1, B=100)"

    # --- Case 3: general output_dim > 1 (MXU second layer path, raw params) ---
    params3 = init_params(kp2, hidden_dim, latent_dim, embedding_dim, 3, model_dim)
    out3 = jax.block_until_ready(continue_predictor_forward(h, z, params3))
    ref3 = reference_forward(h, z, params3)
    assert out3.shape == (batch, 3), out3.shape
    assert jnp.allclose(out3, ref3, atol=2e-2, rtol=2e-2), "mismatch (out_dim=3)"

    print("KERNEL_OK")
</pallas_src>

<mosaic_0001>
module attributes {stable_mosaic.version = 11 : i64} {
  func.func @kernel(%arg0: i32, %arg1: memref<8x32xf32, #tpu.memory_space<vmem>>, %arg2: memref<8x32xf32, #tpu.memory_space<vmem>>, %arg3: memref<32x128xbf16, #tpu.memory_space<vmem>>, %arg4: memref<32x128xbf16, #tpu.memory_space<vmem>>, %arg5: memref<1x128xf32, #tpu.memory_space<vmem>>, %arg6: memref<1x128xf32, #tpu.memory_space<vmem>>, %arg7: memref<1x1xf32, #tpu.memory_space<smem>>, %arg8: memref<8x1xf32, #tpu.memory_space<vmem>>) attributes {dimension_semantics = [#tpu.dimension_semantics<parallel>], iteration_bounds = array<i64: 1>, scalar_prefetch = 0 : i64, scratch_operands = 0 : i64, tpu.core_type = #tpu.core_type<tc>, window_params = [{transform_indices = @transform_0, window_bounds = array<i64: 8, 32>}, {transform_indices = @transform_1, window_bounds = array<i64: 8, 32>}, {pipeline_mode = #tpu.pipeline_mode<synchronous>, transform_indices = @transform_2, window_bounds = array<i64: 32, 128>}, {pipeline_mode = #tpu.pipeline_mode<synchronous>, transform_indices = @transform_3, window_bounds = array<i64: 32, 128>}, {pipeline_mode = #tpu.pipeline_mode<synchronous>, transform_indices = @transform_4, window_bounds = array<i64: 1, 128>}, {pipeline_mode = #tpu.pipeline_mode<synchronous>, transform_indices = @transform_5, window_bounds = array<i64: 1, 128>}, {transform_indices = @transform_6, window_bounds = array<i64: 1, 1>}, {transform_indices = @transform_7, window_bounds = array<i64: 8, 1>}]} {
    %c0 = arith.constant 0 : index
    %c0_0 = arith.constant 0 : index
    %0 = vector.load %arg1[%c0, %c0_0] : memref<8x32xf32, #tpu.memory_space<vmem>>, vector<8x32xf32>
    %1 = arith.truncf %0 : vector<8x32xf32> to vector<8x32xbf16>
    %c0_1 = arith.constant 0 : index
    %c0_2 = arith.constant 0 : index
    %2 = vector.load %arg2[%c0_1, %c0_2] : memref<8x32xf32, #tpu.memory_space<vmem>>, vector<8x32xf32>
    %3 = arith.truncf %2 : vector<8x32xf32> to vector<8x32xbf16>
    %c0_3 = arith.constant 0 : index
    %c0_4 = arith.constant 0 : index
    %4 = vector.load %arg3[%c0_3, %c0_4] : memref<32x128xbf16, #tpu.memory_space<vmem>>, vector<32x128xbf16>
    %cst = arith.constant dense<0.000000e+00> : vector<8x128xf32>
    %5 = tpu.matmul %1, %4, %cst {dimension_numbers = #tpu.dot_dimension_numbers<[1], [0], [0], [1], [0, 0, 1, 1], [], []>} : vector<8x32xbf16>, vector<32x128xbf16>, vector<8x128xf32> -> vector<8x128xf32>
    %c0_5 = arith.constant 0 : index
    %c0_6 = arith.constant 0 : index
    %6 = vector.load %arg4[%c0_5, %c0_6] : memref<32x128xbf16, #tpu.memory_space<vmem>>, vector<32x128xbf16>
    %cst_7 = arith.constant dense<0.000000e+00> : vector<8x128xf32>
    %7 = tpu.matmul %3, %6, %cst_7 {dimension_numbers = #tpu.dot_dimension_numbers<[1], [0], [0], [1], [0, 0, 1, 1], [], []>} : vector<8x32xbf16>, vector<32x128xbf16>, vector<8x128xf32> -> vector<8x128xf32>
    %8 = arith.addf %5, %7 : vector<8x128xf32>
    %c0_8 = arith.constant 0 : index
    %c0_9 = arith.constant 0 : index
    %9 = vector.load %arg5[%c0_8, %c0_9] : memref<1x128xf32, #tpu.memory_space<vmem>>, vector<1x128xf32>
    %10 = vector.broadcast %9 : vector<1x128xf32> to vector<8x128xf32>
    %11 = arith.addf %8, %10 : vector<8x128xf32>
    %cst_10 = arith.constant 0.000000e+00 : f32
    %12 = vector.broadcast %cst_10 : f32 to vector<8x128xf32>
    %13 = arith.maximumf %11, %12 : vector<8x128xf32>
    %c0_11 = arith.constant 0 : index
    %c0_12 = arith.constant 0 : index
    %14 = vector.load %arg6[%c0_11, %c0_12] : memref<1x128xf32, #tpu.memory_space<vmem>>, vector<1x128xf32>
    %15 = vector.broadcast %14 : vector<1x128xf32> to vector<8x128xf32>
    %16 = arith.mulf %13, %15 : vector<8x128xf32>
    %cst_13 = arith.constant dense<0.000000e+00> : vector<8xf32>
    %17 = vector.multi_reduction <add>, %16, %cst_13 [1] : vector<8x128xf32> to vector<8xf32>
    %18 = vector.shape_cast %17 : vector<8xf32> to vector<8x1xf32>
    %c0_14 = arith.constant 0 : index
    %c0_15 = arith.constant 0 : index
    %19 = memref.load %arg7[%c0_14, %c0_15] : memref<1x1xf32, #tpu.memory_space<smem>>
    %20 = vector.broadcast %19 : f32 to vector<8x1xf32>
    %21 = arith.addf %18, %20 : vector<8x1xf32>
    %22 = arith.negf %21 : vector<8x1xf32>
    %23 = math.exp %22 : vector<8x1xf32>
    %cst_16 = arith.constant 1.000000e+00 : f32
    %24 = vector.broadcast %cst_16 : f32 to vector<8x1xf32>
    %25 = arith.addf %24, %23 : vector<8x1xf32>
    %26 = arith.divf %24, %25 : vector<8x1xf32>
    %c0_17 = arith.constant 0 : index
    %c0_18 = arith.constant 0 : index
    %27 = vector.load %arg8[%c0_17, %c0_18] : memref<8x1xf32, #tpu.memory_space<vmem>>, vector<8x1xf32>
    tpu.vector_store %arg8[%c0_17, %c0_18], %26 {strides = array<i32>} : memref<8x1xf32, #tpu.memory_space<vmem>>, vector<8x1xf32>,
    return
  }
  func.func @transform_0(%arg0: i32) -> (i32, i32) {
    %c0_i32 = arith.constant 0 : i32
    %c0_i32_0 = arith.constant 0 : i32
    return %arg0, %c0_i32 : i32, i32
  }
  func.func @transform_1(%arg0: i32) -> (i32, i32) {
    %c0_i32 = arith.constant 0 : i32
    %c0_i32_0 = arith.constant 0 : i32
    return %arg0, %c0_i32 : i32, i32
  }
  func.func @transform_2(%arg0: i32) -> (i32, i32) {
    %c0_i32 = arith.constant 0 : i32
    %c0_i32_0 = arith.constant 0 : i32
    %c0_i32_1 = arith.constant 0 : i32
    return %c0_i32, %c0_i32_0 : i32, i32
  }
  func.func @transform_3(%arg0: i32) -> (i32, i32) {
    %c0_i32 = arith.constant 0 : i32
    %c0_i32_0 = arith.constant 0 : i32
    %c0_i32_1 = arith.constant 0 : i32
    return %c0_i32, %c0_i32_0 : i32, i32
  }
  func.func @transform_4(%arg0: i32) -> (i32, i32) {
    %c0_i32 = arith.constant 0 : i32
    %c0_i32_0 = arith.constant 0 : i32
    %c0_i32_1 = arith.constant 0 : i32
    return %c0_i32, %c0_i32_0 : i32, i32
  }
  func.func @transform_5(%arg0: i32) -> (i32, i32) {
    %c0_i32 = arith.constant 0 : i32
    %c0_i32_0 = arith.constant 0 : i32
    %c0_i32_1 = arith.constant 0 : i32
    return %c0_i32, %c0_i32_0 : i32, i32
  }
  func.func @transform_6(%arg0: i32) -> (i32, i32) {
    %c0_i32 = arith.constant 0 : i32
    %c0_i32_0 = arith.constant 0 : i32
    %c0_i32_1 = arith.constant 0 : i32
    return %c0_i32, %c0_i32_0 : i32, i32
  }
  func.func @transform_7(%arg0: i32) -> (i32, i32) {
    %c0_i32 = arith.constant 0 : i32
    %c0_i32_0 = arith.constant 0 : i32
    return %arg0, %c0_i32 : i32, i32
  }
}

module attributes {stable_mosaic.version = 11 : i64} {
  func.func @kernel(%arg0: i32, %arg1: memref<8x32xf32, #tpu.memory_space<vmem>>, %arg2: memref<8x32xf32, #tpu.memory_space<vmem>>, %arg3: memref<32x128xbf16, #tpu.memory_space<vmem>>, %arg4: memref<32x128xbf16, #tpu.memory_space<vmem>>, %arg5: memref<1x128xf32, #tpu.memory_space<vmem>>, %arg6: memref<1x128xf32, #tpu.memory_space<vmem>>, %arg7: memref<1x1xf32, #tpu.memory_space<smem>>, %arg8: memref<8x1xf32, #tpu.memory_space<vmem>>) attributes {dimension_semantics = [#tpu.dimension_semantics<parallel>], iteration_bounds = array<i64: 1>, scalar_prefetch = 0 : i64, scratch_operands = 0 : i64, tpu.core_type = #tpu.core_type<tc>, window_params = [{transform_indices = @transform_0, window_bounds = array<i64: 8, 32>}, {transform_indices = @transform_1, window_bounds = array<i64: 8, 32>}, {pipeline_mode = #tpu.pipeline_mode<synchronous>, transform_indices = @transform_2, window_bounds = array<i64: 32, 128>}, {pipeline_mode = #tpu.pipeline_mode<synchronous>, transform_indices = @transform_3, window_bounds = array<i64: 32, 128>}, {pipeline_mode = #tpu.pipeline_mode<synchronous>, transform_indices = @transform_4, window_bounds = array<i64: 1, 128>}, {pipeline_mode = #tpu.pipeline_mode<synchronous>, transform_indices = @transform_5, window_bounds = array<i64: 1, 128>}, {transform_indices = @transform_6, window_bounds = array<i64: 1, 1>}, {transform_indices = @transform_7, window_bounds = array<i64: 8, 1>}]} {
    %c0 = arith.constant 0 : index
    %c0_0 = arith.constant 0 : index
    %0 = vector.load %arg1[%c0, %c0_0] : memref<8x32xf32, #tpu.memory_space<vmem>>, vector<8x32xf32>
    %1 = arith.truncf %0 : vector<8x32xf32> to vector<8x32xbf16>
    %c0_1 = arith.constant 0 : index
    %c0_2 = arith.constant 0 : index
    %2 = vector.load %arg2[%c0_1, %c0_2] : memref<8x32xf32, #tpu.memory_space<vmem>>, vector<8x32xf32>
    %3 = arith.truncf %2 : vector<8x32xf32> to vector<8x32xbf16>
    %c0_3 = arith.constant 0 : index
    %c0_4 = arith.constant 0 : index
    %4 = vector.load %arg3[%c0_3, %c0_4] : memref<32x128xbf16, #tpu.memory_space<vmem>>, vector<32x128xbf16>
    %cst = arith.constant dense<0.000000e+00> : vector<8x128xf32>
    %5 = tpu.matmul %1, %4, %cst {dimension_numbers = #tpu.dot_dimension_numbers<[1], [0], [0], [1], [0, 0, 1, 1], [], []>} : vector<8x32xbf16>, vector<32x128xbf16>, vector<8x128xf32> -> vector<8x128xf32>
    %c0_5 = arith.constant 0 : index
    %c0_6 = arith.constant 0 : index
    %6 = vector.load %arg4[%c0_5, %c0_6] : memref<32x128xbf16, #tpu.memory_space<vmem>>, vector<32x128xbf16>
    %cst_7 = arith.constant dense<0.000000e+00> : vector<8x128xf32>
    %7 = tpu.matmul %3, %6, %cst_7 {dimension_numbers = #tpu.dot_dimension_numbers<[1], [0], [0], [1], [0, 0, 1, 1], [], []>} : vector<8x32xbf16>, vector<32x128xbf16>, vector<8x128xf32> -> vector<8x128xf32>
    %8 = arith.addf %5, %7 : vector<8x128xf32>
    %c0_8 = arith.constant 0 : index
    %c0_9 = arith.constant 0 : index
    %9 = vector.load %arg5[%c0_8, %c0_9] : memref<1x128xf32, #tpu.memory_space<vmem>>, vector<1x128xf32>
    %10 = vector.broadcast %9 : vector<1x128xf32> to vector<8x128xf32>
    %11 = arith.addf %8, %10 : vector<8x128xf32>
    %cst_10 = arith.constant 0.000000e+00 : f32
    %12 = vector.broadcast %cst_10 : f32 to vector<8x128xf32>
    %13 = arith.maximumf %11, %12 : vector<8x128xf32>
    %c0_11 = arith.constant 0 : index
    %c0_12 = arith.constant 0 : index
    %14 = vector.load %arg6[%c0_11, %c0_12] : memref<1x128xf32, #tpu.memory_space<vmem>>, vector<1x128xf32>
    %15 = vector.broadcast %14 : vector<1x128xf32> to vector<8x128xf32>
    %16 = arith.mulf %13, %15 : vector<8x128xf32>
    %cst_13 = arith.constant dense<0.000000e+00> : vector<8xf32>
    %17 = vector.multi_reduction <add>, %16, %cst_13 [1] : vector<8x128xf32> to vector<8xf32>
    %18 = vector.shape_cast %17 : vector<8xf32> to vector<8x1xf32>
    %c0_14 = arith.constant 0 : index
    %c0_15 = arith.constant 0 : index
    %19 = memref.load %arg7[%c0_14, %c0_15] : memref<1x1xf32, #tpu.memory_space<smem>>
    %20 = vector.broadcast %19 : f32 to vector<8x1xf32>
    %21 = arith.addf %18, %20 : vector<8x1xf32>
    %22 = arith.negf %21 : vector<8x1xf32>
    %23 = math.exp %22 : vector<8x1xf32>
    %cst_16 = arith.constant 1.000000e+00 : f32
    %24 = vector.broadcast %cst_16 : f32 to vector<8x1xf32>
    %25 = arith.addf %24, %23 : vector<8x1xf32>
    %26 = arith.divf %24, %25 : vector<8x1xf32>
    %c0_17 = arith.constant 0 : index
    %c0_18 = arith.constant 0 : index
    %27 = vector.load %arg8[%c0_17, %c0_18] : memref<8x1xf32, #tpu.memory_space<vmem>>, vector<8x1xf32>
    tpu.vector_store %arg8[%c0_17, %c0_18], %26 {strides = array<i32>} : memref<8x1xf32, #tpu.memory_space<vmem>>, vector<8x1xf32>,
    return
  }
  func.func @transform_0(%arg0: i32) -> (i32, i32) {
    %c0_i32 = arith.constant 0 : i32
    %c0_i32_0 = arith.constant 0 : i32
    return %arg0, %c0_i32 : i32, i32
  }
  func.func @transform_1(%arg0: i32) -> (i32, i32) {
    %c0_i32 = arith.constant 0 : i32
    %c0_i32_0 = arith.constant 0 : i32
    return %arg0, %c0_i32 : i32, i32
  }
  func.func @transform_2(%arg0: i32) -> (i32, i32) {
    %c0_i32 = arith.constant 0 : i32
    %c0_i32_0 = arith.constant 0 : i32
    %c0_i32_1 = arith.constant 0 : i32
    return %c0_i32, %c0_i32_0 : i32, i32
  }
  func.func @transform_3(%arg0: i32) -> (i32, i32) {
    %c0_i32 = arith.constant 0 : i32
    %c0_i32_0 = arith.constant 0 : i32
    %c0_i32_1 = arith.constant 0 : i32
    return %c0_i32, %c0_i32_0 : i32, i32
  }
  func.func @transform_4(%arg0: i32) -> (i32, i32) {
    %c0_i32 = arith.constant 0 : i32
    %c0_i32_0 = arith.constant 0 : i32
    %c0_i32_1 = arith.constant 0 : i32
    return %c0_i32, %c0_i32_0 : i32, i32
  }
  func.func @transform_5(%arg0: i32) -> (i32, i32) {
    %c0_i32 = arith.constant 0 : i32
    %c0_i32_0 = arith.constant 0 : i32
    %c0_i32_1 = arith.constant 0 : i32
    return %c0_i32, %c0_i32_0 : i32, i32
  }
  func.func @transform_6(%arg0: i32) -> (i32, i32) {
    %c0_i32 = arith.constant 0 : i32
    %c0_i32_0 = arith.constant 0 : i32
    %c0_i32_1 = arith.constant 0 : i32
    return %c0_i32, %c0_i32_0 : i32, i32
  }
  func.func @transform_7(%arg0: i32) -> (i32, i32) {
    %c0_i32 = arith.constant 0 : i32
    %c0_i32_0 = arith.constant 0 : i32
    return %arg0, %c0_i32 : i32, i32
  }
}

</mosaic_0001>

<llo_original>
// kernel: tpu_custom_call.1
$region0: #{tpu_custom_call.1}
  #allocation0 [shape = 'u32[]', space=smem, size = 0x4, offset = 0x4, fixed_abs, tag = 'smem constant byte address 0x4 - core index']
  #allocation1 [shape = 'u32[144,128]{1,0:T(1,128)}', space=vmem, size = 0x12000, scoped, tag = 'internal scratch']
  #allocation2 [shape = 'f32[1,1]{1,0:T(1,128)S(6)}', space=smem, size = 0x200, scoped, tag = 'scoped memory for tpu_custom_call.1']
  %s0 = inlined_call_operand.hbm [shape: f32[8,32], index: 0, kind: input, shape index: {}]
  %s1 = inlined_call_operand.hbm [shape: f32[8,32], index: 1, kind: input, shape index: {}]
  %s2 = inlined_call_operand.hbm [shape: bf16[32,128], index: 2, kind: input, shape index: {}]
  %s3 = inlined_call_operand.hbm [shape: bf16[32,128], index: 3, kind: input, shape index: {}]
  %s4 = inlined_call_operand.vmem [shape: f32[1,128], index: 4, kind: input, shape index: {}]
  %s5 = inlined_call_operand.vmem [shape: f32[1,128], index: 5, kind: input, shape index: {}]
  %s6 = inlined_call_operand.<no memory space> [shape: f32[1,1], index: 6, kind: input, shape index: {}]
  %s7 = inlined_call_operand.vmem [shape: f32[8,1], index: 7, kind: output, shape index: {}]
  %s8 = sld [smem:[#allocation0]]
  $region54: #{tpu_custom_call.1} parent=0
    _
  %s10 = ssub.s32 1, %s8
  %s11 = scalar_select 0, %s10, %s8
  %12 = sst [smem:[#allocation2]] %s6
  $region1: #{tpu_custom_call.1} parent=0
    #allocation3 [shape = 'u8[4096]{0}', space=vmem, size = 0x1000, scoped, tag = 'input window, operand 0, single buffered']
    #allocation4 [shape = 's32[1]{0}', space=sflag, size = 0x4, scoped, tag = 'scoped memory for tpu_custom_call.1']
    #allocation5 [shape = 'u8[4096]{0}', space=vmem, size = 0x1000, scoped, tag = 'input window, operand 1, single buffered']
    #allocation6 [shape = 's32[1]{0}', space=sflag, size = 0x4, scoped, tag = 'scoped memory for tpu_custom_call.1']
    #allocation7 [shape = 'u8[8192]{0}', space=vmem, size = 0x2000, scoped, tag = 'input window, operand 2, single buffered']
    #allocation8 [shape = 'u8[8192]{0}', space=vmem, size = 0x2000, scoped, tag = 'input window, operand 3, single buffered']
    #allocation9 [shape = 's32[1]{0}', space=sflag, size = 0x4, scoped, tag = 'scoped memory for tpu_custom_call.1']
    %13 = vsyncpa [#allocation4], 0
    %14 = vsyncpa [#allocation6], 0
    %15 = vsyncpa [#allocation9], 0
    // Predicated region
    $region2: #{tpu_custom_call.1} parent=1 // pred_check
      _
    $region3: #{tpu_custom_call.1} parent=1 // pred_check_branch
      %17 = sbr.rel (0) target = $region5
    $region4: #{tpu_custom_call.1} parent=1 // pred_region
      %s19 = ssub.s32 128, 128
      %20 = vsyncadd [#allocation4], %s19
      %s22 = sshll.u32 [#allocation3], 4
      %s23 = int_to_ptr.vmem [resolvable:$true] %s22
      %25 = dma.hbm_to_vmem [thread:$0]  %s0, 128, %s23, [#allocation4]
    $region5: #{tpu_custom_call.1} parent=1 // pred_fallthru
      _
    // Predicated region
    $region6: #{tpu_custom_call.1} parent=1 // pred_check
      _
    $region7: #{tpu_custom_call.1} parent=1 // pred_check_branch
      %27 = sbr.rel (0) target = $region9
    $region8: #{tpu_custom_call.1} parent=1 // pred_region
      %s29 = ssub.s32 128, 128
      %30 = vsyncadd [#allocation6], %s29
      %s32 = sshll.u32 [#allocation5], 4
      %s33 = int_to_ptr.vmem [resolvable:$true] %s32
      %35 = dma.hbm_to_vmem [thread:$0]  %s1, 128, %s33, [#allocation6]
    $region9: #{tpu_custom_call.1} parent=1 // pred_fallthru
      _
    // Predicated region
    $region10: #{tpu_custom_call.1} parent=1 // pred_check
      _
    $region11: #{tpu_custom_call.1} parent=1 // pred_check_branch
      %37 = sbr.rel (0) target = $region13
    $region12: #{tpu_custom_call.1} parent=1 // pred_region
      %s39 = ssub.s32 256, 256
      %40 = vsyncadd [#allocation6], %s39
      %s41 = sshll.u32 [#allocation7], 4
      %s42 = int_to_ptr.vmem [resolvable:$true] %s41
      %47 = dma.hbm_to_vmem [thread:$0]  %s2, 256, %s42, [#allocation6], 64, 64, 4
    $region13: #{tpu_custom_call.1} parent=1 // pred_fallthru
      _
    // Predicated region
    $region14: #{tpu_custom_call.1} parent=1 // pred_check
      _
    $region15: #{tpu_custom_call.1} parent=1 // pred_check_branch
      %49 = sbr.rel (0) target = $region17
    $region16: #{tpu_custom_call.1} parent=1 // pred_region
      %s51 = ssub.s32 256, 256
      %52 = vsyncadd [#allocation9], %s51
      %s53 = sshll.u32 [#allocation8], 4
      %s54 = int_to_ptr.vmem [resolvable:$true] %s53
      %59 = dma.hbm_to_vmem [thread:$0]  %s3, 256, %s54, [#allocation9], 64, 64, 4
    $region17: #{tpu_custom_call.1} parent=1 // pred_fallthru
      _
    // Predicated region
    $region18: #{tpu_custom_call.1} parent=1 // pred_check
      _
    $region19: #{tpu_custom_call.1} parent=1 // pred_check_branch
      %61 = sbr.rel (0) target = $region21
    $region20: #{tpu_custom_call.1} parent=1 // pred_region
      _
    $region21: #{tpu_custom_call.1} parent=1 // pred_fallthru
      _
    // Predicated region
    $region22: #{tpu_custom_call.1} parent=1 // pred_check
      _
    $region23: #{tpu_custom_call.1} parent=1 // pred_check_branch
      %63 = sbr.rel (0) target = $region25
    $region24: #{tpu_custom_call.1} parent=1 // pred_region
      _
    $region25: #{tpu_custom_call.1} parent=1 // pred_fallthru
      _
    // Predicated region
    $region26: #{tpu_custom_call.1} parent=1 // pred_check
      _
    $region27: #{tpu_custom_call.1} parent=1 // pred_check_branch
      %65 = sbr.rel (0) target = $region29
    $region28: #{tpu_custom_call.1} parent=1 // pred_region
      _
    $region29: #{tpu_custom_call.1} parent=1 // pred_fallthru
      _
    // Predicated region
    $region30: #{tpu_custom_call.1} parent=1 // pred_check
      _
    $region31: #{tpu_custom_call.1} parent=1 // pred_check_branch
      %67 = sbr.rel (0) target = $region33
    $region32: #{tpu_custom_call.1} parent=1 // pred_region
      %68 = dma.done [#allocation4], 128
    $region33: #{tpu_custom_call.1} parent=1 // pred_fallthru
      _
    // Predicated region
    $region34: #{tpu_custom_call.1} parent=1 // pred_check
      _
    $region35: #{tpu_custom_call.1} parent=1 // pred_check_branch
      %70 = sbr.rel (0) target = $region37
    $region36: #{tpu_custom_call.1} parent=1 // pred_region
      %71 = dma.done [#allocation6], 128
    $region37: #{tpu_custom_call.1} parent=1 // pred_fallthru
      _
    // Predicated region
    $region38: #{tpu_custom_call.1} parent=1 // pred_check
      _
    $region39: #{tpu_custom_call.1} parent=1 // pred_check_branch
      %73 = sbr.rel (0) target = $region41
    $region40: #{tpu_custom_call.1} parent=1 // pred_region
      %74 = dma.done [#allocation6], 256
    $region41: #{tpu_custom_call.1} parent=1 // pred_fallthru
      _
    // Predicated region
    $region42: #{tpu_custom_call.1} parent=1 // pred_check
      _
    $region43: #{tpu_custom_call.1} parent=1 // pred_check_branch
      %76 = sbr.rel (0) target = $region45
    $region44: #{tpu_custom_call.1} parent=1 // pred_region
      %77 = dma.done [#allocation9], 256
    $region45: #{tpu_custom_call.1} parent=1 // pred_fallthru
      _
    %v79 = vld [vmem:[#allocation3] sm:$0xff]
    %v80 = vpack.c.bf16 %v79, %v79
    %v81 = vld [vmem:[#allocation5] sm:$0xff]
    %v82 = vpack.c.bf16 %v81, %v81
    %v83 = vld [vmem:[#allocation7] sm:$0xf]
    %v84 = vld [vmem:[#allocation7 + $0x4] sm:$0xf]
    %v85 = vld [vmem:[#allocation7 + $0x8] sm:$0xf]
    %v86 = vld [vmem:[#allocation7 + $0xc] sm:$0xf]
    %v87 = vld [vmem:[#allocation8] sm:$0xf]
    %v88 = vld [vmem:[#allocation8 + $0x4] sm:$0xf]
    %v89 = vld [vmem:[#allocation8 + $0x8] sm:$0xf]
    %v90 = vld [vmem:[#allocation8 + $0xc] sm:$0xf]
    %v95 = vunpack.c.l.b16 %v87
    %v96 = vunpack.c.l.b16 %v88
    %v97 = vunpack.c.l.b16 %v89
    %v98 = vunpack.c.l.b16 %v90
    %v99 = vpack.c.b16 %v96, %v95
    %v100 = vpack.c.b16 %v98, %v97
    %vm103 = vcmask 261120
    %v105 = vsel %vm103, %v82, 0
    %107 = vmatprep.subr.bf16.mxu0 0
    %108 = vmatpush1.bf16.msra.mxu0 0
    %109 = vmatprep.subr.bf16.mxu0 0
    %110 = vmatpush1.bf16.msra.mxu0 0
    %111 = vmatprep.subr.bf16.mxu0 0
    %112 = vmatpush1.bf16.msra.mxu0 0
    %113 = vmatprep.subr.bf16.mxu0 0
    %114 = vmatpush1.bf16.msra.mxu0 0
    %115 = vmatprep.subr.bf16.mxu0 0
    %116 = vmatpush1.bf16.msra.mxu0 0
    %117 = vmatprep.subr.bf16.mxu0 0
    %118 = vmatpush1.bf16.msra.mxu0 0
    %119 = vmatprep.subr.bf16.mxu0 0
    %120 = vmatpush1.bf16.msra.mxu0 %v100
    %121 = vmatprep.subr.bf16.mxu0 0
    %122 = vmatpush1.bf16.msra.mxu0 %v99
    %123 = vmatprep.subr.bf16.mxu0 0
    %124 = vmatpush2.bf16.msra.mxu0 0
    %125 = vmatprep.subr.bf16.mxu0 0
    %126 = vmatpush2.bf16.msra.mxu0 0
    %127 = vmatprep.subr.bf16.mxu0 0
    %128 = vmatpush2.bf16.msra.mxu0 0
    %129 = vmatprep.subr.bf16.mxu0 0
    %130 = vmatpush2.bf16.msra.mxu0 0
    %131 = vmatprep.subr.bf16.mxu0 0
    %132 = vmatpush2.bf16.msra.mxu0 0
    %133 = vmatprep.subr.bf16.mxu0 0
    %134 = vmatpush2.bf16.msra.mxu0 0
    %135 = vmatprep.subr.bf16.mxu0 0
    %136 = vmatpush2.bf16.msra.mxu0 0
    %137 = vmatprep.subr.bf16.mxu0 0
    %138 = vmatpush2.bf16.msra.mxu0 0
    %139 = vmatprep.mubr.bf16.mxu0 0
    %140 = vmatmul.mubr.bf16.gmra.mxu0 %v105
    %v141 = vpop.f32.mrf.mxu0
    %v142 = vadd.f32 0.0, %v141
    %v143 = vpop.f32.mrf.mxu0
    %v144 = vpop.f32.mrf.mxu0
    %v145 = vpop.f32.mrf.mxu0
    %146 = vdwg.mxu0
    %v151 = vunpack.c.l.b16 %v83
    %v152 = vunpack.c.l.b16 %v84
    %v153 = vunpack.c.l.b16 %v85
    %v154 = vunpack.c.l.b16 %v86
    %v155 = vpack.c.b16 %v152, %v151
    %v156 = vpack.c.b16 %v154, %v153
    %v160 = vsel %vm103, %v80, 0
    %162 = vmatprep.subr.bf16.mxu0 0
    %163 = vmatpush1.bf16.msra.mxu0 0
    %164 = vmatprep.subr.bf16.mxu0 0
    %165 = vmatpush1.bf16.msra.mxu0 0
    %166 = vmatprep.subr.bf16.mxu0 0
    %167 = vmatpush1.bf16.msra.mxu0 0
    %168 = vmatprep.subr.bf16.mxu0 0
    %169 = vmatpush1.bf16.msra.mxu0 0
    %170 = vmatprep.subr.bf16.mxu0 0
    %171 = vmatpush1.bf16.msra.mxu0 0
    %172 = vmatprep.subr.bf16.mxu0 0
    %173 = vmatpush1.bf16.msra.mxu0 0
    %174 = vmatprep.subr.bf16.mxu0 0
    %175 = vmatpush1.bf16.msra.mxu0 %v156
    %176 = vmatprep.subr.bf16.mxu0 0
    %177 = vmatpush1.bf16.msra.mxu0 %v155
    %178 = vmatprep.subr.bf16.mxu0 0
    %179 = vmatpush2.bf16.msra.mxu0 0
    %180 = vmatprep.subr.bf16.mxu0 0
    %181 = vmatpush2.bf16.msra.mxu0 0
    %182 = vmatprep.subr.bf16.mxu0 0
    %183 = vmatpush2.bf16.msra.mxu0 0
    %184 = vmatprep.subr.bf16.mxu0 0
    %185 = vmatpush2.bf16.msra.mxu0 0
    %186 = vmatprep.subr.bf16.mxu0 0
    %187 = vmatpush2.bf16.msra.mxu0 0
    %188 = vmatprep.subr.bf16.mxu0 0
    %189 = vmatpush2.bf16.msra.mxu0 0
    %190 = vmatprep.subr.bf16.mxu0 0
    %191 = vmatpush2.bf16.msra.mxu0 0
    %192 = vmatprep.subr.bf16.mxu0 0
    %193 = vmatpush2.bf16.msra.mxu0 0
    %194 = vmatprep.mubr.bf16.mxu0 0
    %195 = vmatmul.mubr.bf16.gmra.mxu0 %v160
    %v196 = vpop.f32.mrf.mxu0
    %v197 = vadd.f32 %v142, %v196
    %v198 = vpop.f32.mrf.mxu0
    %v199 = vpop.f32.mrf.mxu0
    %v200 = vpop.f32.mrf.mxu0
    %201 = vdwg.mxu0
    %v202 = vld [vmem:[%s4] sm:$0x1]
    %v204 = vlaneseq
    %v205 = vshrl.u32 %v204, 7
    %v206 = vsub.s32 0, %v205
    %v207 = vrot.slane %v202, %v206
    %v209 = vadd.f32 %v197, %v207
    %v210 = vmax.f32 %v209, 0.0
    %v211 = vld [vmem:[%s5] sm:$0x1]
    %v213 = vlaneseq
    %v214 = vshrl.u32 %v213, 7
    %v215 = vsub.s32 0, %v214
    %v216 = vrot.slane %v211, %v215
    %v218 = vmul.f32 %v210, %v216
    %219 = vadd.xlane.f32.xlu0 %v218
    %v220 = vpop.xlane.xlu0 %219
    %s221 = sld [smem:[#allocation2]]
    %v222 = vstv %s221
    %v223 = vadd.f32 %v220, %v222
    %v224 = vxor.u32 %v223, 2147483648
    %v225 = vmul.f32 %v224, 1.442695
    %v226 = vpow.pop %v225
    %v227 = vadd.f32 %v226, 1.0
    %v228 = vrcp.pop %v227
    %v229 = vmul.f32 1.0, %v228
    %vm230 = vcmask 7168
    %231 = vst.msk [vmem:[%s7] sm:$0xff] %vm230, %v229
    // Predicated region
    $region46: #{tpu_custom_call.1} parent=1 // pred_check
      _
    $region47: #{tpu_custom_call.1} parent=1 // pred_check_branch
      %233 = sbr.rel (0) target = $region49
    $region48: #{tpu_custom_call.1} parent=1 // pred_region
      _
    $region49: #{tpu_custom_call.1} parent=1 // pred_fallthru
      _
    // Predicated region
    $region50: #{tpu_custom_call.1} parent=1 // pred_check
      _
    $region51: #{tpu_custom_call.1} parent=1 // pred_check_branch
      %235 = sbr.rel (0) target = $region53
    $region52: #{tpu_custom_call.1} parent=1 // pred_region
      _
    $region53: #{tpu_custom_call.1} parent=1 // pred_fallthru
      _
    %236 = vsyncpa [#allocation4], 1
    %237 = vsyncpa [#allocation6], 1
    %238 = vsyncpa [#allocation9], 1

// kernel: tpu_custom_call.1
$region0: #{tpu_custom_call.1}
  #allocation0 [shape = 'u32[]', space=smem, size = 0x4, offset = 0x4, fixed_abs, tag = 'smem constant byte address 0x4 - core index']
  #allocation1 [shape = 'u32[144,128]{1,0:T(1,128)}', space=vmem, size = 0x12000, scoped, tag = 'internal scratch']
  #allocation2 [shape = 'f32[1,1]{1,0:T(1,128)S(6)}', space=smem, size = 0x200, scoped, tag = 'scoped memory for tpu_custom_call.1']
  %s0 = inlined_call_operand.hbm [shape: f32[8,32], index: 0, kind: input, shape index: {}]
  %s1 = inlined_call_operand.hbm [shape: f32[8,32], index: 1, kind: input, shape index: {}]
  %s2 = inlined_call_operand.hbm [shape: bf16[32,128], index: 2, kind: input, shape index: {}]
  %s3 = inlined_call_operand.hbm [shape: bf16[32,128], index: 3, kind: input, shape index: {}]
  %s4 = inlined_call_operand.vmem [shape: f32[1,128], index: 4, kind: input, shape index: {}]
  %s5 = inlined_call_operand.vmem [shape: f32[1,128], index: 5, kind: input, shape index: {}]
  %s6 = inlined_call_operand.<no memory space> [shape: f32[1,1], index: 6, kind: input, shape index: {}]
  %s7 = inlined_call_operand.vmem [shape: f32[8,1], index: 7, kind: output, shape index: {}]
  %s8 = sld [smem:[#allocation0]]
  $region54: #{tpu_custom_call.1} parent=0
    _
  %s10 = ssub.s32 1, %s8
  %s11 = scalar_select 0, %s10, %s8
  %12 = sst [smem:[#allocation2]] %s6
  $region1: #{tpu_custom_call.1} parent=0
    #allocation3 [shape = 'u8[4096]{0}', space=vmem, size = 0x1000, scoped, tag = 'input window, operand 0, single buffered']
    #allocation4 [shape = 's32[1]{0}', space=sflag, size = 0x4, scoped, tag = 'scoped memory for tpu_custom_call.1']
    #allocation5 [shape = 'u8[4096]{0}', space=vmem, size = 0x1000, scoped, tag = 'input window, operand 1, single buffered']
    #allocation6 [shape = 's32[1]{0}', space=sflag, size = 0x4, scoped, tag = 'scoped memory for tpu_custom_call.1']
    #allocation7 [shape = 'u8[8192]{0}', space=vmem, size = 0x2000, scoped, tag = 'input window, operand 2, single buffered']
    #allocation8 [shape = 'u8[8192]{0}', space=vmem, size = 0x2000, scoped, tag = 'input window, operand 3, single buffered']
    #allocation9 [shape = 's32[1]{0}', space=sflag, size = 0x4, scoped, tag = 'scoped memory for tpu_custom_call.1']
    %13 = vsyncpa [#allocation4], 0
    %14 = vsyncpa [#allocation6], 0
    %15 = vsyncpa [#allocation9], 0
    // Predicated region
    $region2: #{tpu_custom_call.1} parent=1 // pred_check
      _
    $region3: #{tpu_custom_call.1} parent=1 // pred_check_branch
      %17 = sbr.rel (0) target = $region5
    $region4: #{tpu_custom_call.1} parent=1 // pred_region
      %s19 = ssub.s32 128, 128
      %20 = vsyncadd [#allocation4], %s19
      %s22 = sshll.u32 [#allocation3], 4
      %s23 = int_to_ptr.vmem [resolvable:$true] %s22
      %25 = dma.hbm_to_vmem [thread:$0]  %s0, 128, %s23, [#allocation4]
    $region5: #{tpu_custom_call.1} parent=1 // pred_fallthru
      _
    // Predicated region
    $region6: #{tpu_custom_call.1} parent=1 // pred_check
      _
    $region7: #{tpu_custom_call.1} parent=1 // pred_check_branch
      %27 = sbr.rel (0) target = $region9
    $region8: #{tpu_custom_call.1} parent=1 // pred_region
      %s29 = ssub.s32 128, 128
      %30 = vsyncadd [#allocation6], %s29
      %s32 = sshll.u32 [#allocation5], 4
      %s33 = int_to_ptr.vmem [resolvable:$true] %s32
      %35 = dma.hbm_to_vmem [thread:$0]  %s1, 128, %s33, [#allocation6]
    $region9: #{tpu_custom_call.1} parent=1 // pred_fallthru
      _
    // Predicated region
    $region10: #{tpu_custom_call.1} parent=1 // pred_check
      _
    $region11: #{tpu_custom_call.1} parent=1 // pred_check_branch
      %37 = sbr.rel (0) target = $region13
    $region12: #{tpu_custom_call.1} parent=1 // pred_region
      %s39 = ssub.s32 256, 256
      %40 = vsyncadd [#allocation6], %s39
      %s41 = sshll.u32 [#allocation7], 4
      %s42 = int_to_ptr.vmem [resolvable:$true] %s41
      %47 = dma.hbm_to_vmem [thread:$0]  %s2, 256, %s42, [#allocation6], 64, 64, 4
    $region13: #{tpu_custom_call.1} parent=1 // pred_fallthru
      _
    // Predicated region
    $region14: #{tpu_custom_call.1} parent=1 // pred_check
      _
    $region15: #{tpu_custom_call.1} parent=1 // pred_check_branch
      %49 = sbr.rel (0) target = $region17
    $region16: #{tpu_custom_call.1} parent=1 // pred_region
      %s51 = ssub.s32 256, 256
      %52 = vsyncadd [#allocation9], %s51
      %s53 = sshll.u32 [#allocation8], 4
      %s54 = int_to_ptr.vmem [resolvable:$true] %s53
      %59 = dma.hbm_to_vmem [thread:$0]  %s3, 256, %s54, [#allocation9], 64, 64, 4
    $region17: #{tpu_custom_call.1} parent=1 // pred_fallthru
      _
    // Predicated region
    $region18: #{tpu_custom_call.1} parent=1 // pred_check
      _
    $region19: #{tpu_custom_call.1} parent=1 // pred_check_branch
      %61 = sbr.rel (0) target = $region21
    $region20: #{tpu_custom_call.1} parent=1 // pred_region
      _
    $region21: #{tpu_custom_call.1} parent=1 // pred_fallthru
      _
    // Predicated region
    $region22: #{tpu_custom_call.1} parent=1 // pred_check
      _
    $region23: #{tpu_custom_call.1} parent=1 // pred_check_branch
      %63 = sbr.rel (0) target = $region25
    $region24: #{tpu_custom_call.1} parent=1 // pred_region
      _
    $region25: #{tpu_custom_call.1} parent=1 // pred_fallthru
      _
    // Predicated region
    $region26: #{tpu_custom_call.1} parent=1 // pred_check
      _
    $region27: #{tpu_custom_call.1} parent=1 // pred_check_branch
      %65 = sbr.rel (0) target = $region29
    $region28: #{tpu_custom_call.1} parent=1 // pred_region
      _
    $region29: #{tpu_custom_call.1} parent=1 // pred_fallthru
      _
    // Predicated region
    $region30: #{tpu_custom_call.1} parent=1 // pred_check
      _
    $region31: #{tpu_custom_call.1} parent=1 // pred_check_branch
      %67 = sbr.rel (0) target = $region33
    $region32: #{tpu_custom_call.1} parent=1 // pred_region
      %68 = dma.done [#allocation4], 128
    $region33: #{tpu_custom_call.1} parent=1 // pred_fallthru
      _
    // Predicated region
    $region34: #{tpu_custom_call.1} parent=1 // pred_check
      _
    $region35: #{tpu_custom_call.1} parent=1 // pred_check_branch
      %70 = sbr.rel (0) target = $region37
    $region36: #{tpu_custom_call.1} parent=1 // pred_region
      %71 = dma.done [#allocation6], 128
    $region37: #{tpu_custom_call.1} parent=1 // pred_fallthru
      _
    // Predicated region
    $region38: #{tpu_custom_call.1} parent=1 // pred_check
      _
    $region39: #{tpu_custom_call.1} parent=1 // pred_check_branch
      %73 = sbr.rel (0) target = $region41
    $region40: #{tpu_custom_call.1} parent=1 // pred_region
      %74 = dma.done [#allocation6], 256
    $region41: #{tpu_custom_call.1} parent=1 // pred_fallthru
      _
    // Predicated region
    $region42: #{tpu_custom_call.1} parent=1 // pred_check
      _
    $region43: #{tpu_custom_call.1} parent=1 // pred_check_branch
      %76 = sbr.rel (0) target = $region45
    $region44: #{tpu_custom_call.1} parent=1 // pred_region
      %77 = dma.done [#allocation9], 256
    $region45: #{tpu_custom_call.1} parent=1 // pred_fallthru
      _
    %v79 = vld [vmem:[#allocation3] sm:$0xff]
    %v80 = vpack.c.bf16 %v79, %v79
    %v81 = vld [vmem:[#allocation5] sm:$0xff]
    %v82 = vpack.c.bf16 %v81, %v81
    %v83 = vld [vmem:[#allocation7] sm:$0xf]
    %v84 = vld [vmem:[#allocation7 + $0x4] sm:$0xf]
    %v85 = vld [vmem:[#allocation7 + $0x8] sm:$0xf]
    %v86 = vld [vmem:[#allocation7 + $0xc] sm:$0xf]
    %v87 = vld [vmem:[#allocation8] sm:$0xf]
    %v88 = vld [vmem:[#allocation8 + $0x4] sm:$0xf]
    %v89 = vld [vmem:[#allocation8 + $0x8] sm:$0xf]
    %v90 = vld [vmem:[#allocation8 + $0xc] sm:$0xf]
    %v95 = vunpack.c.l.b16 %v87
    %v96 = vunpack.c.l.b16 %v88
    %v97 = vunpack.c.l.b16 %v89
    %v98 = vunpack.c.l.b16 %v90
    %v99 = vpack.c.b16 %v96, %v95
    %v100 = vpack.c.b16 %v98, %v97
    %vm103 = vcmask 261120
    %v105 = vsel %vm103, %v82, 0
    %107 = vmatprep.subr.bf16.mxu0 0
    %108 = vmatpush1.bf16.msra.mxu0 0
    %109 = vmatprep.subr.bf16.mxu0 0
    %110 = vmatpush1.bf16.msra.mxu0 0
    %111 = vmatprep.subr.bf16.mxu0 0
    %112 = vmatpush1.bf16.msra.mxu0 0
    %113 = vmatprep.subr.bf16.mxu0 0
    %114 = vmatpush1.bf16.msra.mxu0 0
    %115 = vmatprep.subr.bf16.mxu0 0
    %116 = vmatpush1.bf16.msra.mxu0 0
    %117 = vmatprep.subr.bf16.mxu0 0
    %118 = vmatpush1.bf16.msra.mxu0 0
    %119 = vmatprep.subr.bf16.mxu0 0
    %120 = vmatpush1.bf16.msra.mxu0 %v100
    %121 = vmatprep.subr.bf16.mxu0 0
    %122 = vmatpush1.bf16.msra.mxu0 %v99
    %123 = vmatprep.subr.bf16.mxu0 0
    %124 = vmatpush2.bf16.msra.mxu0 0
    %125 = vmatprep.subr.bf16.mxu0 0
    %126 = vmatpush2.bf16.msra.mxu0 0
    %127 = vmatprep.subr.bf16.mxu0 0
    %128 = vmatpush2.bf16.msra.mxu0 0
    %129 = vmatprep.subr.bf16.mxu0 0
    %130 = vmatpush2.bf16.msra.mxu0 0
    %131 = vmatprep.subr.bf16.mxu0 0
    %132 = vmatpush2.bf16.msra.mxu0 0
    %133 = vmatprep.subr.bf16.mxu0 0
    %134 = vmatpush2.bf16.msra.mxu0 0
    %135 = vmatprep.subr.bf16.mxu0 0
    %136 = vmatpush2.bf16.msra.mxu0 0
    %137 = vmatprep.subr.bf16.mxu0 0
    %138 = vmatpush2.bf16.msra.mxu0 0
    %139 = vmatprep.mubr.bf16.mxu0 0
    %140 = vmatmul.mubr.bf16.gmra.mxu0 %v105
    %v141 = vpop.f32.mrf.mxu0
    %v142 = vadd.f32 0.0, %v141
    %v143 = vpop.f32.mrf.mxu0
    %v144 = vpop.f32.mrf.mxu0
    %v145 = vpop.f32.mrf.mxu0
    %146 = vdwg.mxu0
    %v151 = vunpack.c.l.b16 %v83
    %v152 = vunpack.c.l.b16 %v84
    %v153 = vunpack.c.l.b16 %v85
    %v154 = vunpack.c.l.b16 %v86
    %v155 = vpack.c.b16 %v152, %v151
    %v156 = vpack.c.b16 %v154, %v153
    %v160 = vsel %vm103, %v80, 0
    %162 = vmatprep.subr.bf16.mxu0 0
    %163 = vmatpush1.bf16.msra.mxu0 0
    %164 = vmatprep.subr.bf16.mxu0 0
    %165 = vmatpush1.bf16.msra.mxu0 0
    %166 = vmatprep.subr.bf16.mxu0 0
    %167 = vmatpush1.bf16.msra.mxu0 0
    %168 = vmatprep.subr.bf16.mxu0 0
    %169 = vmatpush1.bf16.msra.mxu0 0
    %170 = vmatprep.subr.bf16.mxu0 0
    %171 = vmatpush1.bf16.msra.mxu0 0
    %172 = vmatprep.subr.bf16.mxu0 0
    %173 = vmatpush1.bf16.msra.mxu0 0
    %174 = vmatprep.subr.bf16.mxu0 0
    %175 = vmatpush1.bf16.msra.mxu0 %v156
    %176 = vmatprep.subr.bf16.mxu0 0
    %177 = vmatpush1.bf16.msra.mxu0 %v155
    %178 = vmatprep.subr.bf16.mxu0 0
    %179 = vmatpush2.bf16.msra.mxu0 0
    %180 = vmatprep.subr.bf16.mxu0 0
    %181 = vmatpush2.bf16.msra.mxu0 0
    %182 = vmatprep.subr.bf16.mxu0 0
    %183 = vmatpush2.bf16.msra.mxu0 0
    %184 = vmatprep.subr.bf16.mxu0 0
    %185 = vmatpush2.bf16.msra.mxu0 0
    %186 = vmatprep.subr.bf16.mxu0 0
    %187 = vmatpush2.bf16.msra.mxu0 0
    %188 = vmatprep.subr.bf16.mxu0 0
    %189 = vmatpush2.bf16.msra.mxu0 0
    %190 = vmatprep.subr.bf16.mxu0 0
    %191 = vmatpush2.bf16.msra.mxu0 0
    %192 = vmatprep.subr.bf16.mxu0 0
    %193 = vmatpush2.bf16.msra.mxu0 0
    %194 = vmatprep.mubr.bf16.mxu0 0
    %195 = vmatmul.mubr.bf16.gmra.mxu0 %v160
    %v196 = vpop.f32.mrf.mxu0
    %v197 = vadd.f32 %v142, %v196
    %v198 = vpop.f32.mrf.mxu0
    %v199 = vpop.f32.mrf.mxu0
    %v200 = vpop.f32.mrf.mxu0
    %201 = vdwg.mxu0
    %v202 = vld [vmem:[%s4] sm:$0x1]
    %v204 = vlaneseq
    %v205 = vshrl.u32 %v204, 7
    %v206 = vsub.s32 0, %v205
    %v207 = vrot.slane %v202, %v206
    %v209 = vadd.f32 %v197, %v207
    %v210 = vmax.f32 %v209, 0.0
    %v211 = vld [vmem:[%s5] sm:$0x1]
    %v213 = vlaneseq
    %v214 = vshrl.u32 %v213, 7
    %v215 = vsub.s32 0, %v214
    %v216 = vrot.slane %v211, %v215
    %v218 = vmul.f32 %v210, %v216
    %219 = vadd.xlane.f32.xlu0 %v218
    %v220 = vpop.xlane.xlu0 %219
    %s221 = sld [smem:[#allocation2]]
    %v222 = vstv %s221
    %v223 = vadd.f32 %v220, %v222
    %v224 = vxor.u32 %v223, 2147483648
    %v225 = vmul.f32 %v224, 1.442695
    %v226 = vpow.pop %v225
    %v227 = vadd.f32 %v226, 1.0
    %v228 = vrcp.pop %v227
    %v229 = vmul.f32 1.0, %v228
    %vm230 = vcmask 7168
    %231 = vst.msk [vmem:[%s7] sm:$0xff] %vm230, %v229
    // Predicated region
    $region46: #{tpu_custom_call.1} parent=1 // pred_check
      _
    $region47: #{tpu_custom_call.1} parent=1 // pred_check_branch
      %233 = sbr.rel (0) target = $region49
    $region48: #{tpu_custom_call.1} parent=1 // pred_region
      _
    $region49: #{tpu_custom_call.1} parent=1 // pred_fallthru
      _
    // Predicated region
    $region50: #{tpu_custom_call.1} parent=1 // pred_check
      _
    $region51: #{tpu_custom_call.1} parent=1 // pred_check_branch
      %235 = sbr.rel (0) target = $region53
    $region52: #{tpu_custom_call.1} parent=1 // pred_region
      _
    $region53: #{tpu_custom_call.1} parent=1 // pred_fallthru
      _
    %236 = vsyncpa [#allocation4], 1
    %237 = vsyncpa [#allocation6], 1
    %238 = vsyncpa [#allocation9], 1

</llo_original>
